<compile_context>
chip_gen: v5e
topology: v5e:2x2
jax: 0.10.0
libtpu: 0.0.40
codegen_flags: <defaults>
</compile_context>

<pallas_src>
import functools

import jax
import jax.numpy as jnp
from jax.experimental import pallas as pl
from jax.experimental.pallas import tpu as pltpu


def _round_up(x, m):
    return (x + m - 1) // m * m


def mlp_kernel(x_ref, w1_ref, b1_ref, w2_ref, b2_ref, o_ref, acc_ref, *,
               approximate_gelu):
    # x_ref : (tm, Cp) input dtype     w1_ref: (Cp, th) bf16   b1_ref: (1, th) f32
    # w2_ref: (th, Op) bf16            b2_ref: (1, Op) f32
    # o_ref : (tm, Op) out dtype       acc_ref: (tm, Op) f32 scratch (across h steps)
    h_idx = pl.program_id(1)

    # Cast the activation tile to bf16 in-kernel (saves a host-side pass over x).
    x = x_ref[...].astype(w1_ref.dtype)

    # fc1 (this hidden block): bf16 MXU matmul, f32 accumulate; bias + GELU in f32.
    h = jnp.dot(x, w1_ref[...], preferred_element_type=jnp.float32)
    h = h + b1_ref[...]
    # tanh GELU goes to the EUP (separate bundle slot); exact erf is a long VPU
    # polynomial that co-saturates the VALU with the MXU on v6e/v7x.
    h = jax.nn.gelu(h, approximate=approximate_gelu)
    h = h.astype(w2_ref.dtype)

    # fc2 partial product for this hidden block: bf16 MXU matmul, f32 accumulate.
    part = jnp.dot(h, w2_ref[...], preferred_element_type=jnp.float32)

    @pl.when(h_idx == 0)
    def _():
        acc_ref[...] = part + b2_ref[...]

    @pl.when(h_idx > 0)
    def _():
        acc_ref[...] = acc_ref[...] + part

    @pl.when(h_idx == pl.num_programs(1) - 1)
    def _():
        # Dropout(p=0.0) is the identity -> nothing to apply.
        # TODO(synk): training-mode dropout (p>0) would need pltpu.prng_* here.
        o_ref[...] = acc_ref[...].astype(o_ref.dtype)


def _vmem_bytes(tm, th, Cp, Op, x_bytes, out_bytes, hk):
    """Working-set estimate for one kernel instance (bytes)."""
    wbuf = 1 if hk == 1 else 2               # resident weights: single buffer
    b = wbuf * (Cp * th + th * Op) * 2       # w1 / w2 blocks (bf16)
    b += wbuf * th * 4 + Op * 4              # biases (f32)
    b += 2 * tm * Cp * x_bytes               # x tile, double-buffered
    b += 2 * tm * Op * out_bytes             # out tile, double-buffered
    b += tm * Op * 4                         # f32 accumulator scratch
    b += tm * th * (4 + 2)                   # fused (tm, th) f32 interm. + bf16 cast
    b += tm * Cp * 2                         # bf16 cast of the x tile
    return b


def _pick_tiles(M, Cp, Hp, Op, x_bytes, out_bytes, budget):
    """Pick (row tile, hidden block) that fits the VMEM budget, largest first."""
    m_cap = _round_up(M, 8)
    tms = sorted({min(t, m_cap) for t in (512, 256, 128, 64, 32, 16, 8)},
                 reverse=True)
    for tm in tms:
        # Prefer fully-resident weights (one H block): no weight re-reads per row tile.
        if _vmem_bytes(tm, Hp, Cp, Op, x_bytes, out_bytes, 1) <= budget:
            return tm, Hp
        # Otherwise stream the hidden dim (w1 column-blocks / w2 row-blocks).
        for th in (2048, 1024, 512, 256, 128):
            if th >= Hp or Hp % th:
                continue
            if _vmem_bytes(tm, th, Cp, Op, x_bytes, out_bytes, Hp // th) <= budget:
                return tm, th
    return 8, 128


def mlp_forward(x, w1, b1, w2, b2, *, compute_dtype=jnp.bfloat16,
                out_dtype=None, approximate_gelu=True):
    """x: (B, N, C).  w1: (C, H), b1: (H,), w2: (H, O), b2: (O,).  Returns (B, N, O)."""
    B, N, C = x.shape
    H = w1.shape[1]
    O = w2.shape[1]
    M = B * N
    out_dtype = x.dtype if out_dtype is None else out_dtype

    # Lane-dense padding targets: channel dims to multiples of 128 (full vregs).
    Cp = _round_up(C, 128)
    Hp = _round_up(H, 128)
    Op = _round_up(O, 128)

    x_bytes = jnp.dtype(x.dtype).itemsize
    o_bytes = jnp.dtype(out_dtype).itemsize

    # Generation-aware VMEM budget (v5e/v6e: 128 MiB per core; v7x: 64 MiB per TC).
    try:
        capacity = int(pltpu.get_tpu_info().vmem_capacity_bytes)
    except Exception:
        capacity = 64 * 1024 * 1024          # conservative fallback (v7x per-TC)
    budget = capacity - (8 << 20)            # headroom for compiler/internal scratch

    tm, th = _pick_tiles(M, Cp, Hp, Op, x_bytes, o_bytes, budget)
    Mp = _round_up(M, tm)
    hk = Hp // th

    # Host-side work only where required: reshape is free; pad only when shapes
    # are not already aligned (x is never pre-cast -- that happens in-kernel).
    x2d = x.reshape(M, C)
    if (Mp, Cp) != (M, C):
        x2d = jnp.pad(x2d, ((0, Mp - M), (0, Cp - C)))
    w1_p = w1.astype(compute_dtype)
    w2_p = w2.astype(compute_dtype)
    if (Cp, Hp) != (C, H):
        w1_p = jnp.pad(w1_p, ((0, Cp - C), (0, Hp - H)))
    if (Hp, Op) != (H, O):
        w2_p = jnp.pad(w2_p, ((0, Hp - H), (0, Op - O)))
    # Padded hidden units: GELU(0 + 0) = 0 and zero w2 rows -> contribute nothing.
    b1_p = b1.astype(jnp.float32)
    b2_p = b2.astype(jnp.float32)
    if Hp != H:
        b1_p = jnp.pad(b1_p, (0, Hp - H))
    if Op != O:
        b2_p = jnp.pad(b2_p, (0, Op - O))
    b1_p = b1_p.reshape(1, Hp)
    b2_p = b2_p.reshape(1, Op)

    # Resident (constant index_map) operands get a single buffer; streamed
    # hidden-dim blocks keep the default double buffering.
    def _wspec(shape, index_map):
        if hk == 1:
            return pl.BlockSpec(shape, index_map, pipeline_mode=pl.Buffered(1))
        return pl.BlockSpec(shape, index_map)

    vmem_limit = _vmem_bytes(tm, th, Cp, Op, x_bytes, o_bytes, hk) + (4 << 20)
    vmem_limit = int(min(max(vmem_limit, 32 << 20), capacity))

    grid = (Mp // tm, hk)

    out2d = pl.pallas_call(
        functools.partial(mlp_kernel, approximate_gelu=approximate_gelu),
        out_shape=jax.ShapeDtypeStruct((Mp, Op), out_dtype),
        grid_spec=pltpu.PrefetchScalarGridSpec(
            num_scalar_prefetch=0,
            grid=grid,
            in_specs=[
                pl.BlockSpec((tm, Cp), lambda i, h: (i, 0)),          # x row tile
                _wspec((Cp, th), lambda i, h: (0, h)),                # fc1 weight block
                _wspec((1, th), lambda i, h: (0, h)),                 # fc1 bias block
                _wspec((th, Op), lambda i, h: (h, 0)),                # fc2 weight block
                pl.BlockSpec((1, Op), lambda i, h: (0, 0),
                             pipeline_mode=pl.Buffered(1)),           # fc2 bias (resident)
            ],
            out_specs=pl.BlockSpec((tm, Op), lambda i, h: (i, 0)),
            scratch_shapes=[pltpu.VMEM((tm, Op), jnp.float32)],
        ),
        compiler_params=pltpu.CompilerParams(
            dimension_semantics=("parallel", "arbitrary"),
            vmem_limit_bytes=vmem_limit,
        ),
    )(x2d, w1_p, b1_p, w2_p, b2_p)

    if (Mp, Op) != (M, O):
        out2d = out2d[:M, :O]
    return out2d.reshape(B, N, O)


def init_params(key, in_features, hidden_features, out_features, dtype=jnp.float32):
    """Deterministic synthetic init (shapes match nn.Linear, stored as (in, out) == W.T)."""
    k1, k2, k3, k4 = jax.random.split(key, 4)
    w1 = jax.random.normal(k1, (in_features, hidden_features), dtype) * 0.02
    b1 = jax.random.normal(k2, (hidden_features,), dtype) * 0.02
    w2 = jax.random.normal(k3, (hidden_features, out_features), dtype) * 0.02
    b2 = jax.random.normal(k4, (out_features,), dtype) * 0.02
    return w1, b1, w2, b2


def _ref(x, w1, b1, w2, b2):
    # Matches nn.GELU()'s exact-erf default; kernel's tanh GELU + bf16 MXU inputs
    # stay well within the test tolerance.
    return jax.nn.gelu(x @ w1 + b1, approximate=False) @ w2 + b2


if __name__ == "__main__":
    # Small shapes implied by the forward: token tensor (B, N, C)
    B, N = 2, 8
    in_features = 32
    hidden_features = 64
    out_features = 32          # out_features defaults to in_features

    key = jax.random.PRNGKey(0)
    kx, kp = jax.random.split(key)
    x = jax.random.normal(kx, (B, N, in_features), jnp.float32)
    w1, b1, w2, b2 = init_params(kp, in_features, hidden_features, out_features)

    y = mlp_forward(x, w1, b1, w2, b2)
    jax.block_until_ready(y)
    assert y.shape == (B, N, out_features)
    ref = _ref(x, w1, b1, w2, b2)
    assert jnp.allclose(y, ref, atol=1e-2, rtol=1e-2), float(jnp.max(jnp.abs(y - ref)))

    # Second check: row count not a multiple of 8 (exercises the padding path).
    x2 = jax.random.normal(jax.random.PRNGKey(1), (3, 5, in_features), jnp.float32)
    y2 = mlp_forward(x2, w1, b1, w2, b2)
    jax.block_until_ready(y2)
    ref2 = _ref(x2, w1, b1, w2, b2)
    assert y2.shape == (3, 5, out_features)
    assert jnp.allclose(y2, ref2, atol=1e-2, rtol=1e-2), float(jnp.max(jnp.abs(y2 - ref2)))

    print("KERNEL_OK")
</pallas_src>

<mosaic_0001>
module attributes {stable_mosaic.version = 11 : i64} {
  func.func @mlp_kernel(%arg0: i32, %arg1: i32, %arg2: memref<16x128xf32, #tpu.memory_space<vmem>>, %arg3: memref<128x128xbf16, #tpu.memory_space<vmem>>, %arg4: memref<1x128xf32, #tpu.memory_space<vmem>>, %arg5: memref<128x128xbf16, #tpu.memory_space<vmem>>, %arg6: memref<1x128xf32, #tpu.memory_space<vmem>>, %arg7: memref<16x128xf32, #tpu.memory_space<vmem>>, %arg8: memref<16x128xf32, #tpu.memory_space<vmem>>) attributes {dimension_semantics = [#tpu.dimension_semantics<parallel>, #tpu.dimension_semantics<arbitrary>], iteration_bounds = array<i64: 1, 1>, scalar_prefetch = 0 : i64, scratch_operands = 1 : i64, tpu.core_type = #tpu.core_type<tc>, window_params = [{transform_indices = @transform_0, window_bounds = array<i64: 16, 128>}, {pipeline_mode = #tpu.pipeline_mode<synchronous>, transform_indices = @transform_1, window_bounds = array<i64: 128, 128>}, {pipeline_mode = #tpu.pipeline_mode<synchronous>, transform_indices = @transform_2, window_bounds = array<i64: 1, 128>}, {pipeline_mode = #tpu.pipeline_mode<synchronous>, transform_indices = @transform_3, window_bounds = array<i64: 128, 128>}, {pipeline_mode = #tpu.pipeline_mode<synchronous>, transform_indices = @transform_4, window_bounds = array<i64: 1, 128>}, {transform_indices = @transform_5, window_bounds = array<i64: 16, 128>}]} {
    %c0 = arith.constant 0 : index
    %c0_0 = arith.constant 0 : index
    %0 = vector.load %arg2[%c0, %c0_0] : memref<16x128xf32, #tpu.memory_space<vmem>>, vector<16x128xf32>
    %1 = arith.truncf %0 : vector<16x128xf32> to vector<16x128xbf16>
    %c0_1 = arith.constant 0 : index
    %c0_2 = arith.constant 0 : index
    %2 = vector.load %arg3[%c0_1, %c0_2] : memref<128x128xbf16, #tpu.memory_space<vmem>>, vector<128x128xbf16>
    %cst = arith.constant dense<0.000000e+00> : vector<16x128xf32>
    %3 = tpu.matmul %1, %2, %cst {dimension_numbers = #tpu.dot_dimension_numbers<[1], [0], [0], [1], [0, 0, 1, 1], [], []>} : vector<16x128xbf16>, vector<128x128xbf16>, vector<16x128xf32> -> vector<16x128xf32>
    %c0_3 = arith.constant 0 : index
    %c0_4 = arith.constant 0 : index
    %4 = vector.load %arg4[%c0_3, %c0_4] : memref<1x128xf32, #tpu.memory_space<vmem>>, vector<1x128xf32>
    %5 = vector.broadcast %4 : vector<1x128xf32> to vector<16x128xf32>
    %6 = arith.addf %3, %5 : vector<16x128xf32>
    %7 = arith.mulf %6, %6 : vector<16x128xf32>
    %8 = arith.mulf %6, %7 : vector<16x128xf32>
    %cst_5 = arith.constant 4.471500e-02 : f32
    %9 = vector.broadcast %cst_5 : f32 to vector<16x128xf32>
    %10 = arith.mulf %9, %8 : vector<16x128xf32>
    %11 = arith.addf %6, %10 : vector<16x128xf32>
    %cst_6 = arith.constant 0.797884583 : f32
    %12 = vector.broadcast %cst_6 : f32 to vector<16x128xf32>
    %13 = arith.mulf %12, %11 : vector<16x128xf32>
    %14 = math.tanh %13 : vector<16x128xf32>
    %cst_7 = arith.constant 1.000000e+00 : f32
    %15 = vector.broadcast %cst_7 : f32 to vector<16x128xf32>
    %16 = arith.addf %15, %14 : vector<16x128xf32>
    %cst_8 = arith.constant 5.000000e-01 : f32
    %17 = vector.broadcast %cst_8 : f32 to vector<16x128xf32>
    %18 = arith.mulf %17, %16 : vector<16x128xf32>
    %19 = arith.mulf %6, %18 : vector<16x128xf32>
    %20 = arith.truncf %19 : vector<16x128xf32> to vector<16x128xbf16>
    %c0_9 = arith.constant 0 : index
    %c0_10 = arith.constant 0 : index
    %21 = vector.load %arg5[%c0_9, %c0_10] : memref<128x128xbf16, #tpu.memory_space<vmem>>, vector<128x128xbf16>
    %cst_11 = arith.constant dense<0.000000e+00> : vector<16x128xf32>
    %22 = tpu.matmul %20, %21, %cst_11 {dimension_numbers = #tpu.dot_dimension_numbers<[1], [0], [0], [1], [0, 0, 1, 1], [], []>} : vector<16x128xbf16>, vector<128x128xbf16>, vector<16x128xf32> -> vector<16x128xf32>
    %c0_i32 = arith.constant 0 : i32
    %23 = arith.cmpi eq, %arg1, %c0_i32 : i32
    %24 = arith.extui %23 : i1 to i32
    %c0_i32_12 = arith.constant 0 : i32
    %25 = arith.cmpi ne, %24, %c0_i32_12 : i32
    scf.if %25 {
      %c0_17 = arith.constant 0 : index
      %c0_18 = arith.constant 0 : index
      %32 = vector.load %arg6[%c0_17, %c0_18] : memref<1x128xf32, #tpu.memory_space<vmem>>, vector<1x128xf32>
      %33 = vector.broadcast %32 : vector<1x128xf32> to vector<16x128xf32>
      %34 = arith.addf %22, %33 : vector<16x128xf32>
      %c0_19 = arith.constant 0 : index
      %c0_20 = arith.constant 0 : index
      %35 = vector.load %arg8[%c0_19, %c0_20] : memref<16x128xf32, #tpu.memory_space<vmem>>, vector<16x128xf32>
      tpu.vector_store %arg8[%c0_19, %c0_20], %34 {strides = array<i32>} : memref<16x128xf32, #tpu.memory_space<vmem>>, vector<16x128xf32>,
    } else {
    }
    %c0_i32_13 = arith.constant 0 : i32
    %26 = arith.cmpi sgt, %arg1, %c0_i32_13 : i32
    %27 = arith.extui %26 : i1 to i32
    %c0_i32_14 = arith.constant 0 : i32
    %28 = arith.cmpi ne, %27, %c0_i32_14 : i32
    scf.if %28 {
      %c0_17 = arith.constant 0 : index
      %c0_18 = arith.constant 0 : index
      %32 = vector.load %arg8[%c0_17, %c0_18] : memref<16x128xf32, #tpu.memory_space<vmem>>, vector<16x128xf32>
      %33 = arith.addf %32, %22 : vector<16x128xf32>
      %c0_19 = arith.constant 0 : index
      %c0_20 = arith.constant 0 : index
      %34 = vector.load %arg8[%c0_19, %c0_20] : memref<16x128xf32, #tpu.memory_space<vmem>>, vector<16x128xf32>
      tpu.vector_store %arg8[%c0_19, %c0_20], %33 {strides = array<i32>} : memref<16x128xf32, #tpu.memory_space<vmem>>, vector<16x128xf32>,
    } else {
    }
    %c0_i32_15 = arith.constant 0 : i32
    %29 = arith.cmpi eq, %arg1, %c0_i32_15 : i32
    %30 = arith.extui %29 : i1 to i32
    %c0_i32_16 = arith.constant 0 : i32
    %31 = arith.cmpi ne, %30, %c0_i32_16 : i32
    scf.if %31 {
      %c0_17 = arith.constant 0 : index
      %c0_18 = arith.constant 0 : index
      %32 = vector.load %arg8[%c0_17, %c0_18] : memref<16x128xf32, #tpu.memory_space<vmem>>, vector<16x128xf32>
      %c0_19 = arith.constant 0 : index
      %c0_20 = arith.constant 0 : index
      %33 = vector.load %arg7[%c0_19, %c0_20] : memref<16x128xf32, #tpu.memory_space<vmem>>, vector<16x128xf32>
      tpu.vector_store %arg7[%c0_19, %c0_20], %32 {strides = array<i32>} : memref<16x128xf32, #tpu.memory_space<vmem>>, vector<16x128xf32>,
    } else {
    }
    return
  }
  func.func @transform_0(%arg0: i32, %arg1: i32) -> (i32, i32) {
    %c0_i32 = arith.constant 0 : i32
    %c0_i32_0 = arith.constant 0 : i32
    return %arg0, %c0_i32 : i32, i32
  }
  func.func @transform_1(%arg0: i32, %arg1: i32) -> (i32, i32) {
    %c0_i32 = arith.constant 0 : i32
    %c0_i32_0 = arith.constant 0 : i32
    return %c0_i32, %arg1 : i32, i32
  }
  func.func @transform_2(%arg0: i32, %arg1: i32) -> (i32, i32) {
    %c0_i32 = arith.constant 0 : i32
    %c0_i32_0 = arith.constant 0 : i32
    return %c0_i32, %arg1 : i32, i32
  }
  func.func @transform_3(%arg0: i32, %arg1: i32) -> (i32, i32) {
    %c0_i32 = arith.constant 0 : i32
    %c0_i32_0 = arith.constant 0 : i32
    return %arg1, %c0_i32 : i32, i32
  }
  func.func @transform_4(%arg0: i32, %arg1: i32) -> (i32, i32) {
    %c0_i32 = arith.constant 0 : i32
    %c0_i32_0 = arith.constant 0 : i32
    %c0_i32_1 = arith.constant 0 : i32
    return %c0_i32, %c0_i32_0 : i32, i32
  }
  func.func @transform_5(%arg0: i32, %arg1: i32) -> (i32, i32) {
    %c0_i32 = arith.constant 0 : i32
    %c0_i32_0 = arith.constant 0 : i32
    return %arg0, %c0_i32 : i32, i32
  }
}

</mosaic_0001>

<llo_original>
// kernel: tpu_custom_call.1
$region0: #{tpu_custom_call.1}
  #allocation0 [shape = 'u32[]', space=smem, size = 0x4, offset = 0x4, fixed_abs, tag = 'smem constant byte address 0x4 - core index']
  #allocation1 [shape = 'u32[72,128]{1,0:T(1,128)}', space=vmem, size = 0x9000, scoped, tag = 'internal scratch']
  #allocation2 [shape = 'f32[16,128]{1,0:T(8,128)}', space=vmem, size = 0x2000, scoped, tag = 'scratch operand']
  %s0 = inlined_call_operand.hbm [shape: f32[16,128], index: 0, kind: input, shape index: {}]
  %s1 = inlined_call_operand.hbm [shape: bf16[128,128], index: 1, kind: input, shape index: {}]
  %s2 = inlined_call_operand.vmem [shape: f32[1,128], index: 2, kind: input, shape index: {}]
  %s3 = inlined_call_operand.hbm [shape: bf16[128,128], index: 3, kind: input, shape index: {}]
  %s4 = inlined_call_operand.vmem [shape: f32[1,128], index: 4, kind: input, shape index: {}]
  %s5 = inlined_call_operand.hbm [shape: f32[16,128], index: 5, kind: output, shape index: {}]
  %s6 = sld [smem:[#allocation0]]
  $region54: #{tpu_custom_call.1} parent=0
    _
  %s8 = ssub.s32 1, %s6
  %s9 = scalar_select 0, %s8, %s6
  $region1: #{tpu_custom_call.1} parent=0
    #allocation3 [shape = 'u8[8192]{0}', space=vmem, size = 0x2000, scoped, tag = 'input window, operand 0, single buffered']
    #allocation4 [shape = 's32[1]{0}', space=sflag, size = 0x4, scoped, tag = 'scoped memory for tpu_custom_call.1']
    #allocation5 [shape = 's32[1]{0}', space=sflag, size = 0x4, scoped, tag = 'scoped memory for tpu_custom_call.1']
    #allocation6 [shape = 'u8[32768]{0}', space=vmem, size = 0x8000, scoped, tag = 'input window, operand 1, single buffered']
    #allocation7 [shape = 's32[1]{0}', space=sflag, size = 0x4, scoped, tag = 'scoped memory for tpu_custom_call.1']
    #allocation8 [shape = 'u8[32768]{0}', space=vmem, size = 0x8000, scoped, tag = 'input window, operand 3, single buffered']
    #allocation9 [shape = 'u8[8192]{0}', space=vmem, size = 0x2000, scoped, tag = 'output window, operand 0, single buffered']
    %10 = vsyncpa [#allocation4], 0
    %11 = vsyncpa [#allocation7], 0
    %12 = vsyncpa [#allocation5], 0
    // Predicated region
    $region2: #{tpu_custom_call.1} parent=1 // pred_check
      _
    $region3: #{tpu_custom_call.1} parent=1 // pred_check_branch
      %14 = sbr.rel (0) target = $region5
    $region4: #{tpu_custom_call.1} parent=1 // pred_region
      %16 = vsyncadd [#allocation4], 0
      %s17 = sshll.u32 %s0, 4
      %s18 = int_to_ptr.hbm [resolvable:$true] %s17
      %s19 = sshll.u32 [#allocation3], 4
      %s20 = int_to_ptr.vmem [resolvable:$true] %s19
      %25 = dma.hbm_to_vmem [thread:$0]  %s18, 256, %s20, [#allocation4], 128, 128, 8
    $region5: #{tpu_custom_call.1} parent=1 // pred_fallthru
      _
    // Predicated region
    $region6: #{tpu_custom_call.1} parent=1 // pred_check
      _
    $region7: #{tpu_custom_call.1} parent=1 // pred_check_branch
      %27 = sbr.rel (0) target = $region9
    $region8: #{tpu_custom_call.1} parent=1 // pred_region
      %29 = vsyncadd [#allocation7], 0
      %s30 = sshll.u32 %s1, 4
      %s31 = int_to_ptr.hbm [resolvable:$true] %s30
      %s32 = sshll.u32 [#allocation6], 4
      %s33 = int_to_ptr.vmem [resolvable:$true] %s32
      %38 = dma.hbm_to_vmem [thread:$0]  %s31, 1024, %s33, [#allocation7], 64, 64, 4
    $region9: #{tpu_custom_call.1} parent=1 // pred_fallthru
      _
    // Predicated region
    $region10: #{tpu_custom_call.1} parent=1 // pred_check
      _
    $region11: #{tpu_custom_call.1} parent=1 // pred_check_branch
      %40 = sbr.rel (0) target = $region13
    $region12: #{tpu_custom_call.1} parent=1 // pred_region
      _
    $region13: #{tpu_custom_call.1} parent=1 // pred_fallthru
      _
    // Predicated region
    $region14: #{tpu_custom_call.1} parent=1 // pred_check
      _
    $region15: #{tpu_custom_call.1} parent=1 // pred_check_branch
      %42 = sbr.rel (0) target = $region17
    $region16: #{tpu_custom_call.1} parent=1 // pred_region
      %44 = vsyncadd [#allocation7], 0
      %s45 = sshll.u32 %s3, 4
      %s46 = int_to_ptr.hbm [resolvable:$true] %s45
      %s47 = sshll.u32 [#allocation8], 4
      %s48 = int_to_ptr.vmem [resolvable:$true] %s47
      %53 = dma.hbm_to_vmem [thread:$0]  %s46, 1024, %s48, [#allocation7], 64, 64, 4
    $region17: #{tpu_custom_call.1} parent=1 // pred_fallthru
      _
    // Predicated region
    $region18: #{tpu_custom_call.1} parent=1 // pred_check
      _
    $region19: #{tpu_custom_call.1} parent=1 // pred_check_branch
      %55 = sbr.rel (0) target = $region21
    $region20: #{tpu_custom_call.1} parent=1 // pred_region
      _
    $region21: #{tpu_custom_call.1} parent=1 // pred_fallthru
      _
    // Predicated region
    $region22: #{tpu_custom_call.1} parent=1 // pred_check
      _
    $region23: #{tpu_custom_call.1} parent=1 // pred_check_branch
      %57 = sbr.rel (0) target = $region25
    $region24: #{tpu_custom_call.1} parent=1 // pred_region
      %59 = dma.done [#allocation4], 256
    $region25: #{tpu_custom_call.1} parent=1 // pred_fallthru
      _
    // Predicated region
    $region26: #{tpu_custom_call.1} parent=1 // pred_check
      _
    $region27: #{tpu_custom_call.1} parent=1 // pred_check_branch
      %61 = sbr.rel (0) target = $region29
    $region28: #{tpu_custom_call.1} parent=1 // pred_region
      %63 = dma.done [#allocation7], 1024
    $region29: #{tpu_custom_call.1} parent=1 // pred_fallthru
      _
    // Predicated region
    $region30: #{tpu_custom_call.1} parent=1 // pred_check
      _
    $region31: #{tpu_custom_call.1} parent=1 // pred_check_branch
      %65 = sbr.rel (0) target = $region33
    $region32: #{tpu_custom_call.1} parent=1 // pred_region
      %67 = dma.done [#allocation7], 1024
    $region33: #{tpu_custom_call.1} parent=1 // pred_fallthru
      _
    %v68 = vld [vmem:[#allocation3] sm:$0xff]
    %v69 = vld [vmem:[#allocation3 + $0x8] sm:$0xff]
    %v70 = vpack.c.bf16 %v69, %v68
    %v71 = vld [vmem:[#allocation6] sm:$0xf]
    %v72 = vld [vmem:[#allocation6 + $0x4] sm:$0xf]
    %v73 = vld [vmem:[#allocation6 + $0x8] sm:$0xf]
    %v74 = vld [vmem:[#allocation6 + $0xc] sm:$0xf]
    %v75 = vld [vmem:[#allocation6 + $0x10] sm:$0xf]
    %v76 = vld [vmem:[#allocation6 + $0x14] sm:$0xf]
    %v77 = vld [vmem:[#allocation6 + $0x18] sm:$0xf]
    %v78 = vld [vmem:[#allocation6 + $0x1c] sm:$0xf]
    %v79 = vld [vmem:[#allocation6 + $0x20] sm:$0xf]
    %v80 = vld [vmem:[#allocation6 + $0x24] sm:$0xf]
    %v81 = vld [vmem:[#allocation6 + $0x28] sm:$0xf]
    %v82 = vld [vmem:[#allocation6 + $0x2c] sm:$0xf]
    %v83 = vld [vmem:[#allocation6 + $0x30] sm:$0xf]
    %v84 = vld [vmem:[#allocation6 + $0x34] sm:$0xf]
    %v85 = vld [vmem:[#allocation6 + $0x38] sm:$0xf]
    %v86 = vld [vmem:[#allocation6 + $0x3c] sm:$0xf]
    %v87 = vld [vmem:[%s2] sm:$0x1]
    %v89 = vperm.slane %v87, 0
    %v107 = vunpack.c.l.b16 %v71
    %v108 = vunpack.c.l.b16 %v72
    %v109 = vunpack.c.l.b16 %v73
    %v110 = vunpack.c.l.b16 %v74
    %v111 = vunpack.c.l.b16 %v75
    %v112 = vunpack.c.l.b16 %v76
    %v113 = vunpack.c.l.b16 %v77
    %v114 = vunpack.c.l.b16 %v78
    %v115 = vunpack.c.l.b16 %v79
    %v116 = vunpack.c.l.b16 %v80
    %v117 = vunpack.c.l.b16 %v81
    %v118 = vunpack.c.l.b16 %v82
    %v119 = vunpack.c.l.b16 %v83
    %v120 = vunpack.c.l.b16 %v84
    %v121 = vunpack.c.l.b16 %v85
    %v122 = vunpack.c.l.b16 %v86
    %v123 = vpack.c.b16 %v108, %v107
    %v124 = vpack.c.b16 %v110, %v109
    %v125 = vpack.c.b16 %v112, %v111
    %v126 = vpack.c.b16 %v114, %v113
    %v127 = vpack.c.b16 %v116, %v115
    %v128 = vpack.c.b16 %v118, %v117
    %v129 = vpack.c.b16 %v120, %v119
    %v130 = vpack.c.b16 %v122, %v121
    %139 = vmatpush.bf16.msra.mxu0 %v130
    %140 = vmatpush.bf16.msra.mxu0 %v129
    %141 = vmatpush.bf16.msra.mxu0 %v128
    %142 = vmatpush.bf16.msra.mxu0 %v127
    %143 = vmatpush.bf16.msra.mxu0 %v126
    %144 = vmatpush.bf16.msra.mxu0 %v125
    %145 = vmatpush.bf16.msra.mxu0 %v124
    %146 = vmatpush.bf16.msra.mxu0 %v123
    %147 = vmatmul.bf16.gmra.mxu0 %v70
    %v148 = vpop.f32.mrf.mxu0
    %v149 = vadd.f32 %v89, %v148
    %v150 = vpop.f32.mrf.mxu0
    %v151 = vadd.f32 %v89, %v150
    %152 = vdwg.mxu0
    %v153 = vmul.f32 %v149, %v149
    %v154 = vmul.f32 %v151, %v151
    %v155 = vmul.f32 %v149, %v153
    %v156 = vmul.f32 %v151, %v154
    %v157 = vmul.f32 %v155, 0.044715
    %v158 = vmul.f32 %v156, 0.044715
    %v159 = vadd.f32 %v149, %v157
    %v160 = vadd.f32 %v151, %v158
    %v161 = vmul.f32 %v159, 0.7978846
    %v162 = vmul.f32 %v160, 0.7978846
    %v163 = vtanh.pop %v161
    %v164 = vtanh.pop %v162
    %v165 = vadd.f32 %v163, 1.0
    %v166 = vadd.f32 %v164, 1.0
    %v167 = vmul.f32 %v165, 0.5
    %v168 = vmul.f32 %v166, 0.5
    %v169 = vmul.f32 %v149, %v167
    %v170 = vmul.f32 %v151, %v168
    %v171 = vpack.c.bf16 %v170, %v169
    %v172 = vld [vmem:[#allocation8] sm:$0xf]
    %v173 = vld [vmem:[#allocation8 + $0x4] sm:$0xf]
    %v174 = vld [vmem:[#allocation8 + $0x8] sm:$0xf]
    %v175 = vld [vmem:[#allocation8 + $0xc] sm:$0xf]
    %v176 = vld [vmem:[#allocation8 + $0x10] sm:$0xf]
    %v177 = vld [vmem:[#allocation8 + $0x14] sm:$0xf]
    %v178 = vld [vmem:[#allocation8 + $0x18] sm:$0xf]
    %v179 = vld [vmem:[#allocation8 + $0x1c] sm:$0xf]
    %v180 = vld [vmem:[#allocation8 + $0x20] sm:$0xf]
    %v181 = vld [vmem:[#allocation8 + $0x24] sm:$0xf]
    %v182 = vld [vmem:[#allocation8 + $0x28] sm:$0xf]
    %v183 = vld [vmem:[#allocation8 + $0x2c] sm:$0xf]
    %v184 = vld [vmem:[#allocation8 + $0x30] sm:$0xf]
    %v185 = vld [vmem:[#allocation8 + $0x34] sm:$0xf]
    %v186 = vld [vmem:[#allocation8 + $0x38] sm:$0xf]
    %v187 = vld [vmem:[#allocation8 + $0x3c] sm:$0xf]
    %v204 = vunpack.c.l.b16 %v172
    %v205 = vunpack.c.l.b16 %v173
    %v206 = vunpack.c.l.b16 %v174
    %v207 = vunpack.c.l.b16 %v175
    %v208 = vunpack.c.l.b16 %v176
    %v209 = vunpack.c.l.b16 %v177
    %v210 = vunpack.c.l.b16 %v178
    %v211 = vunpack.c.l.b16 %v179
    %v212 = vunpack.c.l.b16 %v180
    %v213 = vunpack.c.l.b16 %v181
    %v214 = vunpack.c.l.b16 %v182
    %v215 = vunpack.c.l.b16 %v183
    %v216 = vunpack.c.l.b16 %v184
    %v217 = vunpack.c.l.b16 %v185
    %v218 = vunpack.c.l.b16 %v186
    %v219 = vunpack.c.l.b16 %v187
    %v220 = vpack.c.b16 %v205, %v204
    %v221 = vpack.c.b16 %v207, %v206
    %v222 = vpack.c.b16 %v209, %v208
    %v223 = vpack.c.b16 %v211, %v210
    %v224 = vpack.c.b16 %v213, %v212
    %v225 = vpack.c.b16 %v215, %v214
    %v226 = vpack.c.b16 %v217, %v216
    %v227 = vpack.c.b16 %v219, %v218
    %236 = vmatpush.bf16.msra.mxu0 %v227
    %237 = vmatpush.bf16.msra.mxu0 %v226
    %238 = vmatpush.bf16.msra.mxu0 %v225
    %239 = vmatpush.bf16.msra.mxu0 %v224
    %240 = vmatpush.bf16.msra.mxu0 %v223
    %241 = vmatpush.bf16.msra.mxu0 %v222
    %242 = vmatpush.bf16.msra.mxu0 %v221
    %243 = vmatpush.bf16.msra.mxu0 %v220
    %244 = vmatmul.bf16.gmra.mxu0 %v171
    %v245 = vpop.f32.mrf.mxu0
    %v246 = vadd.f32 0.0, %v245
    %v247 = vpop.f32.mrf.mxu0
    %v248 = vadd.f32 0.0, %v247
    %249 = vdwg.mxu0
    %p250 = scmp.eq.s32.totalorder 0, 0
    // Predicated region
    $region34: #{tpu_custom_call.1} parent=1 // pred_check
      %p251 = pneg %p250
    $region35: #{tpu_custom_call.1} parent=1 // pred_check_branch
      %253 = sbr.rel (%p251) target = $region37
    $region36: #{tpu_custom_call.1} parent=1 // pred_region
      %v254 = vld [vmem:[%s4] sm:$0x1]
      %v256 = vperm.slane %v254, 0
      %v258 = vadd.f32 %v246, %v256
      %v259 = vadd.f32 %v248, %v256
      %260 = vst [vmem:[#allocation2] sm:$0xff] %v258
      %261 = vst [vmem:[#allocation2 + $0x8] sm:$0xff] %v259
    $region37: #{tpu_custom_call.1} parent=1 // pred_fallthru
      _
    %p262 = scmp.gt.s32.totalorder 0, 0
    // Predicated region
    $region38: #{tpu_custom_call.1} parent=1 // pred_check
      %p263 = pneg %p262
    $region39: #{tpu_custom_call.1} parent=1 // pred_check_branch
      %265 = sbr.rel (%p263) target = $region41
    $region40: #{tpu_custom_call.1} parent=1 // pred_region
      %v266 = vld [vmem:[#allocation2] sm:$0xff]
      %v267 = vld [vmem:[#allocation2 + $0x8] sm:$0xff]
      %v268 = vadd.f32 %v266, %v246
      %v269 = vadd.f32 %v267, %v248
      %270 = vst [vmem:[#allocation2] sm:$0xff] %v268
      %271 = vst [vmem:[#allocation2 + $0x8] sm:$0xff] %v269
    $region41: #{tpu_custom_call.1} parent=1 // pred_fallthru
      _
    // Predicated region
    $region42: #{tpu_custom_call.1} parent=1 // pred_check
      %p272 = pneg %p250
    $region43: #{tpu_custom_call.1} parent=1 // pred_check_branch
      %274 = sbr.rel (%p272) target = $region45
    $region44: #{tpu_custom_call.1} parent=1 // pred_region
      %v275 = vld [vmem:[#allocation2] sm:$0xff]
      %v276 = vld [vmem:[#allocation2 + $0x8] sm:$0xff]
      %277 = vst [vmem:[#allocation9] sm:$0xff] %v275
      %278 = vst [vmem:[#allocation9 + $0x8] sm:$0xff] %v276
    $region45: #{tpu_custom_call.1} parent=1 // pred_fallthru
      _
    // Predicated region
    $region46: #{tpu_custom_call.1} parent=1 // pred_check
      _
    $region47: #{tpu_custom_call.1} parent=1 // pred_check_branch
      %280 = sbr.rel (0) target = $region49
    $region48: #{tpu_custom_call.1} parent=1 // pred_region
      %282 = vsyncadd [#allocation5], 0
      %s283 = sshll.u32 [#allocation9], 4
      %s284 = int_to_ptr.vmem [resolvable:$true] %s283
      %s285 = sshll.u32 %s5, 4
      %s286 = int_to_ptr.hbm [resolvable:$true] %s285
      %291 = dma.vmem_to_hbm [thread:$0]  %s284, 256, %s286, [#allocation5], 128, 128, 8
    $region49: #{tpu_custom_call.1} parent=1 // pred_fallthru
      _
    // Predicated region
    $region50: #{tpu_custom_call.1} parent=1 // pred_check
      _
    $region51: #{tpu_custom_call.1} parent=1 // pred_check_branch
      %293 = sbr.rel (0) target = $region53
    $region52: #{tpu_custom_call.1} parent=1 // pred_region
      %295 = dma.done [#allocation5], 256
    $region53: #{tpu_custom_call.1} parent=1 // pred_fallthru
      _
    %296 = vsyncpa [#allocation4], 1
    %297 = vsyncpa [#allocation7], 1
    %298 = vsyncpa [#allocation5], 1

</llo_original>
